<compile_context>
chip_gen: v7x
topology: tpu7x:2x2x1
jax: 0.10.0
libtpu: 0.0.40
codegen_flags: <defaults>
</compile_context>

<pallas_src>
import functools

import jax
import jax.numpy as jnp
from jax.experimental import pallas as pl
from jax.experimental.pallas import tpu as pltpu

LANE = 128


def channel_attention_kernel(x_ref, w1_ref, w2_ref, out_ref, sum_sc, max_sc,
                             *, hw, thw, acc_w, needs_mask):
    # x_ref  : (1, C, THW) tile of the flattened-spatial input (input dtype)
    # w1_ref : (C_mid, C)   w2_ref : (C, C_mid)
    # out_ref: (1, 1, C)
    # sum_sc : (1, C, acc_w) f32 running-sum partials (narrow, lane-dense)
    # max_sc : (1, C, acc_w) running-max partials in the input dtype
    k = pl.program_id(1)
    last = pl.num_programs(1) - 1
    nchunks = thw // acc_w

    @pl.when(k == 0)
    def _init():
        sum_sc[...] = jnp.zeros_like(sum_sc)
        max_sc[...] = jnp.full_like(max_sc, -jnp.inf)

    x = x_ref[...]                                    # (1, C, thw), input dtype

    def accumulate(masked):
        # Fold the tile to (1, C, acc_w) partials in-register: unrolled static
        # lane-chunk slices -> pure VPU adds/maxes, then ONE small RMW of the
        # narrow scratch (instead of a THW-wide scratch RMW per vreg).
        def chunk(i):
            c = x[:, :, i * acc_w:(i + 1) * acc_w]
            if masked:
                lane = jax.lax.broadcasted_iota(jnp.int32, c.shape, 2)
                valid = (k * thw + i * acc_w + lane) < hw
                c_sum = jnp.where(valid, c, jnp.zeros_like(c))
                c_max = jnp.where(valid, c, jnp.full_like(c, -jnp.inf))
            else:
                c_sum = c
                c_max = c
            return c_sum.astype(jnp.float32), c_max

        psum, pmax = chunk(0)
        for i in range(1, nchunks):
            cs, cm = chunk(i)
            psum = psum + cs
            pmax = jnp.maximum(pmax, cm)
        sum_sc[...] = sum_sc[...] + psum
        max_sc[...] = jnp.maximum(max_sc[...], pmax)

    if needs_mask:
        # Masking can only matter on the single remainder tile: keep the
        # iota/compare/select work off the hot path of every full tile.
        @pl.when(k < last)
        def _full_tiles():
            accumulate(masked=False)

        @pl.when(k == last)
        def _remainder_tile():
            accumulate(masked=True)
    else:
        accumulate(masked=False)

    @pl.when(k == last)
    def _finalize():
        # Single small cross-lane (XLU) reduce, once per batch.
        avg = sum_sc[...].sum(axis=-1) * jnp.float32(1.0 / hw)         # (1, C)
        mx = max_sc[...].max(axis=-1).astype(jnp.float32)              # (1, C)

        # fc(avg) + fc(max) fused: one matmul pair on the stacked (2, C) matrix.
        v = jnp.concatenate([avg, mx], axis=0)                         # (2, C)
        w1 = w1_ref[...].astype(jnp.float32)                           # (C_mid, C)
        w2 = w2_ref[...].astype(jnp.float32)                           # (C, C_mid)

        h = jax.lax.dot_general(v, w1, (((1,), (1,)), ((), ())),
                                preferred_element_type=jnp.float32)    # (2, C_mid)
        h = jnp.maximum(h, 0.0)                                        # ReLU
        o = jax.lax.dot_general(h, w2, (((1,), (1,)), ((), ())),
                                preferred_element_type=jnp.float32)    # (2, C)

        out = jax.nn.sigmoid(o[0:1, :] + o[1:2, :])                    # (1, C)
        out_ref[...] = jnp.reshape(out, (1, 1, -1)).astype(out_ref.dtype)


def _choose_block_hw(hw, c, itemsize, *, target_lanes=4096,
                     x_budget_bytes=16 << 20, n_buffers=2):
    """Largest lane-dense (multiple-of-128) HW tile within the x VMEM budget.

    With the narrow accumulators the scratch no longer scales with THW, so
    only the pipelined x buffers count against the budget.
    """
    if hw <= LANE:
        return hw                                   # single full-width block
    by_budget = (x_budget_bytes // (n_buffers * c * itemsize)) // LANE * LANE
    thw = int(max(LANE, min(target_lanes, by_budget)))
    if hw <= thw:
        return hw                                   # whole spatial axis in one block
    return thw


def channel_attention(x, w1, w2, *, block_hw=None):
    """x: (B, C, H, W).  w1: (C_mid, C).  w2: (C, C_mid).  Returns (B, C, 1, 1)."""
    B, C, H, W = x.shape
    C_mid = w1.shape[0]
    assert w1.shape == (C_mid, C) and w2.shape == (C, C_mid)

    hw = H * W
    x3 = x.reshape(B, C, hw)

    itemsize = jnp.dtype(x.dtype).itemsize
    thw = _choose_block_hw(hw, C, itemsize) if block_hw is None else int(block_hw)
    n_hw = pl.cdiv(hw, thw)
    needs_mask = (hw % thw) != 0
    acc_w = LANE if thw % LANE == 0 else thw        # narrow accumulator width

    # 3-deep pipelining only when per-step tiles are tiny and the HW loop is
    # long enough for the extra buffer to hide DMA-issue jitter.
    deep_pipeline = (n_hw >= 8) and (C * thw * itemsize <= (1 << 20))
    n_buf = 3 if deep_pipeline else 2
    if deep_pipeline:
        x_spec = pl.BlockSpec((1, C, thw), lambda b, k: (b, 0, k),
                              pipeline_mode=pl.Buffered(3))
    else:
        x_spec = pl.BlockSpec((1, C, thw), lambda b, k: (b, 0, k))

    kernel = functools.partial(channel_attention_kernel,
                               hw=hw, thw=thw, acc_w=acc_w, needs_mask=needs_mask)

    # Exact VMEM accounting: pipelined x tiles + weight buffers + out block +
    # narrow scratch.  Auto tile choice keeps this well under v7x's 64 MiB;
    # 2 MiB headroom covers Mosaic-internal scratch and (8,128) padding.
    w_bytes = int(w1.size * jnp.dtype(w1.dtype).itemsize
                  + w2.size * jnp.dtype(w2.dtype).itemsize)
    vmem_bytes = (n_buf * C * thw * itemsize        # pipelined x tiles
                  + 2 * w_bytes                     # weight buffers
                  + 2 * C * itemsize                # out block
                  + C * acc_w * (4 + itemsize))     # sum (f32) + max (x dtype)
    vmem_limit = int(max(8 << 20, vmem_bytes + (2 << 20)))

    cost = pl.CostEstimate(
        flops=2 * B * C * hw + 8 * B * C * C_mid,
        transcendentals=B * C,
        bytes_accessed=B * C * hw * itemsize + w_bytes + B * C * itemsize,
    )

    out = pl.pallas_call(
        kernel,
        out_shape=jax.ShapeDtypeStruct((B, 1, C), x.dtype),
        grid_spec=pltpu.PrefetchScalarGridSpec(
            num_scalar_prefetch=0,
            grid=(B, n_hw),
            in_specs=[
                x_spec,
                pl.BlockSpec((C_mid, C), lambda b, k: (0, 0)),
                pl.BlockSpec((C, C_mid), lambda b, k: (0, 0)),
            ],
            out_specs=pl.BlockSpec((1, 1, C), lambda b, k: (b, 0, 0)),
            scratch_shapes=[
                pltpu.VMEM((1, C, acc_w), jnp.float32),   # running-sum partials
                pltpu.VMEM((1, C, acc_w), x.dtype),       # running-max partials
            ],
        ),
        compiler_params=pltpu.CompilerParams(
            dimension_semantics=("parallel", "arbitrary"),
            vmem_limit_bytes=vmem_limit,
        ),
        cost_estimate=cost,
    )(x3, w1, w2)

    return out.reshape(B, C, 1, 1)


def channel_attention_ref(x, w1, w2):
    """Pure-JAX reference mirroring the PyTorch forward (f32)."""
    xf = x.astype(jnp.float32)
    avg = jnp.mean(xf, axis=(2, 3))   # (B, C)
    mx = jnp.max(xf, axis=(2, 3))     # (B, C)

    def fc(v):
        return jnp.maximum(v @ w1.astype(jnp.float32).T, 0.0) @ w2.astype(jnp.float32).T

    out = jax.nn.sigmoid(fc(avg) + fc(mx))
    return out[:, :, None, None]


if __name__ == "__main__":
    root = jax.random.PRNGKey(0)
    kx, k1, k2, kx3, k13, k23, kx4, kx5 = jax.random.split(root, 8)

    # Case 1: multi-step HW grid + parallel B axis (streamed accumulation).
    B, C, H, W = 2, 32, 16, 16            # in_planes=32, ratio=8 -> C_mid=4
    C_mid = C // 8
    x = jax.random.normal(kx, (B, C, H, W), dtype=jnp.float32)
    w1 = jax.random.normal(k1, (C_mid, C), dtype=jnp.float32) * (2.0 / C) ** 0.5
    w2 = jax.random.normal(k2, (C, C_mid), dtype=jnp.float32) * (2.0 / C_mid) ** 0.5

    out = jax.block_until_ready(channel_attention(x, w1, w2, block_hw=128))
    ref = channel_attention_ref(x, w1, w2)
    assert out.shape == (B, C, 1, 1)
    assert jnp.allclose(out, ref, atol=1e-5, rtol=1e-5)

    # Case 2: auto tile choice (single block, multi-chunk in-register fold).
    out2 = jax.block_until_ready(channel_attention(x, w1, w2))
    assert jnp.allclose(out2, ref, atol=1e-5, rtol=1e-5)

    # Case 3: HW not a multiple of the tile -> masked remainder tile only.
    B3, C3, H3, W3 = 1, 16, 16, 12        # HW = 192, block_hw = 128
    C3_mid = C3 // 4
    x3 = jax.random.normal(kx3, (B3, C3, H3, W3), dtype=jnp.float32)
    w13 = jax.random.normal(k13, (C3_mid, C3), dtype=jnp.float32) * (2.0 / C3) ** 0.5
    w23 = jax.random.normal(k23, (C3, C3_mid), dtype=jnp.float32) * (2.0 / C3_mid) ** 0.5
    out3 = jax.block_until_ready(channel_attention(x3, w13, w23, block_hw=128))
    ref3 = channel_attention_ref(x3, w13, w23)
    assert jnp.allclose(out3, ref3, atol=1e-5, rtol=1e-5)

    # Case 4: large HW. 4a auto (single 4096-lane block, 32-chunk fold);
    #         4b tiny tiles + long loop -> exercises 3-deep pipelining.
    x4 = jax.random.normal(kx4, (B, C, 64, 64), dtype=jnp.float32)
    ref4 = channel_attention_ref(x4, w1, w2)
    out4a = jax.block_until_ready(channel_attention(x4, w1, w2))
    out4b = jax.block_until_ready(channel_attention(x4, w1, w2, block_hw=128))
    assert jnp.allclose(out4a, ref4, atol=1e-5, rtol=1e-5)
    assert jnp.allclose(out4b, ref4, atol=1e-5, rtol=1e-5)

    # Case 5: bf16 input -> max path stays bf16, sum accumulates in f32.
    B5, C5, H5, W5 = 1, 64, 16, 16
    C5_mid = C5 // 16
    x5 = jax.random.normal(kx5, (B5, C5, H5, W5), dtype=jnp.bfloat16)
    w15 = jax.random.normal(k13, (C5_mid, C5), dtype=jnp.float32) * (2.0 / C5) ** 0.5
    w25 = jax.random.normal(k23, (C5, C5_mid), dtype=jnp.float32) * (2.0 / C5_mid) ** 0.5
    out5 = jax.block_until_ready(channel_attention(x5, w15, w25, block_hw=128))
    ref5 = channel_attention_ref(x5, w15, w25)
    assert jnp.allclose(out5.astype(jnp.float32), ref5, atol=1e-2, rtol=1e-2)

    print("KERNEL_OK")
</pallas_src>

<mosaic_0001>
module attributes {stable_mosaic.version = 11 : i64} {
  func.func @channel_attention_kernel(%arg0: i32, %arg1: i32, %arg2: memref<1x32x128xf32, #tpu.memory_space<vmem>>, %arg3: memref<4x32xf32, #tpu.memory_space<vmem>>, %arg4: memref<32x4xf32, #tpu.memory_space<vmem>>, %arg5: memref<1x1x32xf32, #tpu.memory_space<vmem>>, %arg6: memref<1x32x128xf32, #tpu.memory_space<vmem>>, %arg7: memref<1x32x128xf32, #tpu.memory_space<vmem>>) attributes {dimension_semantics = [#tpu.dimension_semantics<parallel>, #tpu.dimension_semantics<arbitrary>], iteration_bounds = array<i64: 2, 2>, scalar_prefetch = 0 : i64, scratch_operands = 2 : i64, tpu.core_type = #tpu.core_type<tc>, window_params = [{transform_indices = @transform_0, window_bounds = array<i64: 1, 32, 128>}, {pipeline_mode = #tpu.pipeline_mode<synchronous>, transform_indices = @transform_1, window_bounds = array<i64: 4, 32>}, {pipeline_mode = #tpu.pipeline_mode<synchronous>, transform_indices = @transform_2, window_bounds = array<i64: 32, 4>}, {transform_indices = @transform_3, window_bounds = array<i64: 1, 1, 32>}]} {
    %c0_i32 = arith.constant 0 : i32
    %0 = arith.cmpi eq, %arg1, %c0_i32 : i32
    %1 = arith.extui %0 : i1 to i32
    %c0_i32_0 = arith.constant 0 : i32
    %2 = arith.cmpi ne, %1, %c0_i32_0 : i32
    scf.if %2 {
      %cst = arith.constant 0.000000e+00 : f32
      %13 = vector.broadcast %cst : f32 to vector<1x32x128xf32>
      %c0_16 = arith.constant 0 : index
      %c0_17 = arith.constant 0 : index
      %c0_18 = arith.constant 0 : index
      %14 = vector.load %arg6[%c0_16, %c0_17, %c0_18] : memref<1x32x128xf32, #tpu.memory_space<vmem>>, vector<1x32x128xf32>
      tpu.vector_store %arg6[%c0_16, %c0_17, %c0_18], %13 {strides = array<i32>} : memref<1x32x128xf32, #tpu.memory_space<vmem>>, vector<1x32x128xf32>,
      %cst_19 = arith.constant 0xFF800000 : f32
      %15 = vector.broadcast %cst_19 : f32 to vector<1x32x128xf32>
      %c0_20 = arith.constant 0 : index
      %c0_21 = arith.constant 0 : index
      %c0_22 = arith.constant 0 : index
      %16 = vector.load %arg7[%c0_20, %c0_21, %c0_22] : memref<1x32x128xf32, #tpu.memory_space<vmem>>, vector<1x32x128xf32>
      tpu.vector_store %arg7[%c0_20, %c0_21, %c0_22], %15 {strides = array<i32>} : memref<1x32x128xf32, #tpu.memory_space<vmem>>, vector<1x32x128xf32>,
    } else {
    }
    %c0 = arith.constant 0 : index
    %c0_1 = arith.constant 0 : index
    %c0_2 = arith.constant 0 : index
    %3 = vector.load %arg2[%c0, %c0_1, %c0_2] : memref<1x32x128xf32, #tpu.memory_space<vmem>>, vector<1x32x128xf32>
    %c0_3 = arith.constant 0 : index
    %c0_4 = arith.constant 0 : index
    %c0_5 = arith.constant 0 : index
    %4 = vector.load %arg6[%c0_3, %c0_4, %c0_5] : memref<1x32x128xf32, #tpu.memory_space<vmem>>, vector<1x32x128xf32>
    %5 = arith.addf %4, %3 : vector<1x32x128xf32>
    %c0_6 = arith.constant 0 : index
    %c0_7 = arith.constant 0 : index
    %c0_8 = arith.constant 0 : index
    %6 = vector.load %arg6[%c0_6, %c0_7, %c0_8] : memref<1x32x128xf32, #tpu.memory_space<vmem>>, vector<1x32x128xf32>
    tpu.vector_store %arg6[%c0_6, %c0_7, %c0_8], %5 {strides = array<i32>} : memref<1x32x128xf32, #tpu.memory_space<vmem>>, vector<1x32x128xf32>,
    %c0_9 = arith.constant 0 : index
    %c0_10 = arith.constant 0 : index
    %c0_11 = arith.constant 0 : index
    %7 = vector.load %arg7[%c0_9, %c0_10, %c0_11] : memref<1x32x128xf32, #tpu.memory_space<vmem>>, vector<1x32x128xf32>
    %8 = arith.maximumf %7, %3 : vector<1x32x128xf32>
    %c0_12 = arith.constant 0 : index
    %c0_13 = arith.constant 0 : index
    %c0_14 = arith.constant 0 : index
    %9 = vector.load %arg7[%c0_12, %c0_13, %c0_14] : memref<1x32x128xf32, #tpu.memory_space<vmem>>, vector<1x32x128xf32>
    tpu.vector_store %arg7[%c0_12, %c0_13, %c0_14], %8 {strides = array<i32>} : memref<1x32x128xf32, #tpu.memory_space<vmem>>, vector<1x32x128xf32>,
    %c1_i32 = arith.constant 1 : i32
    %10 = arith.cmpi eq, %arg1, %c1_i32 : i32
    %11 = arith.extui %10 : i1 to i32
    %c0_i32_15 = arith.constant 0 : i32
    %12 = arith.cmpi ne, %11, %c0_i32_15 : i32
    scf.if %12 {
      %c0_16 = arith.constant 0 : index
      %c0_17 = arith.constant 0 : index
      %c0_18 = arith.constant 0 : index
      %13 = vector.load %arg6[%c0_16, %c0_17, %c0_18] : memref<1x32x128xf32, #tpu.memory_space<vmem>>, vector<1x32x128xf32>
      %cst = arith.constant dense<0.000000e+00> : vector<1x32xf32>
      %14 = vector.multi_reduction <add>, %13, %cst [2] : vector<1x32x128xf32> to vector<1x32xf32>
      %cst_19 = arith.constant 3.906250e-03 : f32
      %15 = vector.broadcast %cst_19 : f32 to vector<1x32xf32>
      %16 = arith.mulf %14, %15 : vector<1x32xf32>
      %c0_20 = arith.constant 0 : index
      %c0_21 = arith.constant 0 : index
      %c0_22 = arith.constant 0 : index
      %17 = vector.load %arg7[%c0_20, %c0_21, %c0_22] : memref<1x32x128xf32, #tpu.memory_space<vmem>>, vector<1x32x128xf32>
      %cst_23 = arith.constant dense<0xFF800000> : vector<1x32xf32>
      %18 = vector.multi_reduction <maximumf>, %17, %cst_23 [2] : vector<1x32x128xf32> to vector<1x32xf32>
      %19 = tpu.concatenate %16, %18 in 0 : vector<1x32xf32>, vector<1x32xf32> -> vector<2x32xf32>
      %c0_24 = arith.constant 0 : index
      %c0_25 = arith.constant 0 : index
      %20 = vector.load %arg3[%c0_24, %c0_25] : memref<4x32xf32, #tpu.memory_space<vmem>>, vector<4x32xf32>
      %c0_26 = arith.constant 0 : index
      %c0_27 = arith.constant 0 : index
      %21 = vector.load %arg4[%c0_26, %c0_27] : memref<32x4xf32, #tpu.memory_space<vmem>>, vector<32x4xf32>
      %cst_28 = arith.constant dense<0.000000e+00> : vector<2x4xf32>
      %22 = tpu.matmul %19, %20, %cst_28 {dimension_numbers = #tpu.dot_dimension_numbers<[1], [1], [0], [0], [0, 0, 1, 0], [], []>} : vector<2x32xf32>, vector<4x32xf32>, vector<2x4xf32> -> vector<2x4xf32>
      %cst_29 = arith.constant 0.000000e+00 : f32
      %23 = vector.broadcast %cst_29 : f32 to vector<2x4xf32>
      %24 = arith.maximumf %22, %23 : vector<2x4xf32>
      %cst_30 = arith.constant dense<0.000000e+00> : vector<2x32xf32>
      %25 = tpu.matmul %24, %21, %cst_30 {dimension_numbers = #tpu.dot_dimension_numbers<[1], [1], [0], [0], [0, 0, 1, 0], [], []>} : vector<2x4xf32>, vector<32x4xf32>, vector<2x32xf32> -> vector<2x32xf32>
      %26 = vector.extract_strided_slice %25 {offsets = [0, 0], sizes = [1, 32], strides = [1, 1]} : vector<2x32xf32> to vector<1x32xf32>
      %27 = vector.extract_strided_slice %25 {offsets = [1, 0], sizes = [1, 32], strides = [1, 1]} : vector<2x32xf32> to vector<1x32xf32>
      %28 = arith.addf %26, %27 : vector<1x32xf32>
      %29 = arith.negf %28 : vector<1x32xf32>
      %30 = math.exp %29 : vector<1x32xf32>
      %cst_31 = arith.constant 1.000000e+00 : f32
      %31 = vector.broadcast %cst_31 : f32 to vector<1x32xf32>
      %32 = arith.addf %31, %30 : vector<1x32xf32>
      %33 = arith.divf %31, %32 : vector<1x32xf32>
      %34 = vector.shape_cast %33 : vector<1x32xf32> to vector<1x1x32xf32>
      %c0_32 = arith.constant 0 : index
      %c0_33 = arith.constant 0 : index
      %c0_34 = arith.constant 0 : index
      %35 = vector.load %arg5[%c0_32, %c0_33, %c0_34] : memref<1x1x32xf32, #tpu.memory_space<vmem>>, vector<1x1x32xf32>
      tpu.vector_store %arg5[%c0_32, %c0_33, %c0_34], %34 {strides = array<i32>} : memref<1x1x32xf32, #tpu.memory_space<vmem>>, vector<1x1x32xf32>,
    } else {
    }
    return
  }
  func.func @transform_0(%arg0: i32, %arg1: i32) -> (i32, i32, i32) {
    %c0_i32 = arith.constant 0 : i32
    %c0_i32_0 = arith.constant 0 : i32
    return %arg0, %c0_i32, %arg1 : i32, i32, i32
  }
  func.func @transform_1(%arg0: i32, %arg1: i32) -> (i32, i32) {
    %c0_i32 = arith.constant 0 : i32
    %c0_i32_0 = arith.constant 0 : i32
    %c0_i32_1 = arith.constant 0 : i32
    return %c0_i32, %c0_i32_0 : i32, i32
  }
  func.func @transform_2(%arg0: i32, %arg1: i32) -> (i32, i32) {
    %c0_i32 = arith.constant 0 : i32
    %c0_i32_0 = arith.constant 0 : i32
    %c0_i32_1 = arith.constant 0 : i32
    return %c0_i32, %c0_i32_0 : i32, i32
  }
  func.func @transform_3(%arg0: i32, %arg1: i32) -> (i32, i32, i32) {
    %c0_i32 = arith.constant 0 : i32
    %c0_i32_0 = arith.constant 0 : i32
    %c0_i32_1 = arith.constant 0 : i32
    return %arg0, %c0_i32, %c0_i32_0 : i32, i32, i32
  }
}

</mosaic_0001>

<llo_original>
// kernel: tpu_custom_call.1
$region0: #{tpu_custom_call.1}
  #allocation0 [shape = 'u32[]', space=smem, size = 0x4, offset = 0x4, fixed_abs, tag = 'smem constant byte address 0x4 - core index']
  #allocation1 [shape = 'u32[144,128]{1,0:T(1,128)}', space=vmem, size = 0x12000, scoped, tag = 'internal scratch']
  #allocation2 [shape = 'f32[1,32,128]{2,1,0:T(8,128)}', space=vmem, size = 0x4000, scoped, tag = 'scratch operand']
  #allocation3 [shape = 'f32[1,32,128]{2,1,0:T(8,128)}', space=vmem, size = 0x4000, scoped, tag = 'scratch operand']
  %s0 = inlined_call_operand.hbm [shape: f32[2,32,256], index: 0, kind: input, shape index: {}]
  %s1 = inlined_call_operand.vmem [shape: f32[4,32], index: 1, kind: input, shape index: {}]
  %s2 = inlined_call_operand.vmem [shape: f32[32,4], index: 2, kind: input, shape index: {}]
  %s3 = inlined_call_operand.hbm [shape: f32[2,1,32], index: 3, kind: output, shape index: {}]
  %s4 = sld [smem:[#allocation0]]
  $region57: #{tpu_custom_call.1} parent=0
    _
  %s6 = ssub.s32 1, %s4
  %s7 = scalar_select 0, %s6, %s4
  $region1: #{tpu_custom_call.1} parent=0
    #allocation4 [shape = 'u8[32768]{0}', space=vmem, size = 0x8000, scoped, tag = 'input window, operand 0']
    #allocation5 [shape = 's32[2]{0}', space=sflag, size = 0x8, scoped, tag = 'scoped memory for tpu_custom_call.1']
    #allocation6 [shape = 's32[2]{0}', space=sflag, size = 0x8, scoped, tag = 'scoped memory for tpu_custom_call.1']
    #allocation7 [shape = 'u8[1024]{0}', space=vmem, size = 0x400, scoped, tag = 'output window, operand 0']
    %8 = vsyncpa [#allocation5], 0
    %s9 = scalar_lea.sflag [#allocation5], 1
    %10 = vsyncpa %s9, 0
    %11 = vsyncpa [#allocation6], 0
    %s12 = scalar_lea.sflag [#allocation6], 1
    %13 = vsyncpa %s12, 0
    loop: start=0, step=1, limit=6
    $region2: #{tpu_custom_call.1} parent=1 // loop_pre_header
      _
    $region3: #{tpu_custom_call.1} parent=1 // loop_header
      %s15 = sphi 0, %s19
      %p16 = scmp.ge.s32.totalorder %s15, 6
      %s22 = sphi 0, %s34
      %s23 = sphi 0, %s30
      %s24 = sphi 0, %s22
      %s25 = sphi 0, %s23
      %s26 = sphi 0, %s24
      %s27 = sphi 0, %s25
      %s39 = sphi 0, %s41
      %s42 = sphi 0, %s39
      %s43 = sphi 0, %s42
      %s59 = sphi 0, %s43
      %s63 = sphi 0, %s63
      %s65 = sphi 0, %s63
      %s66 = sphi 0, %s65
      %s80 = sphi 0, %s66
      %s84 = sphi 0, %s84
      %s86 = sphi 0, %s84
      %s87 = sphi 0, %s86
      %s101 = sphi 0, %s87
      %s107 = sphi 0, %s109
      %s110 = sphi 0, %s107
      %s111 = sphi 0, %s110
      %s127 = sphi 0, %s111
    $region4: #{tpu_custom_call.1} parent=1 // loop_header_branch
      %18 = sbr.rel (%p16) target = $region8
    $region5: #{tpu_custom_call.1} parent=1 // loop_body
      %s20 = ssub.s32 %s15, 1
      %s21 = ssub.s32 %s15, 2
      %s28 = sadd.s32 1, %s23
      %p29 = scmp.ge.s32.totalorder %s28, 2
      %s30 = scalar_select %p29, 0, %s28
      %s31 = sadd.s32 1, %s22
      %s32 = scalar_select %p29, %s31, %s22
      %p33 = scmp.ge.s32.totalorder %s32, 2
      %s34 = scalar_select %p33, 0, %s32
      %s35 = ssub.s32 %s22, %s34
      %s36 = ssub.s32 %s23, %s30
      %s37 = sor.u32 %s35, %s36
      %p38 = scmp.eq.s32.totalorder %s37, 0
      %s40 = sadd.s32 %s39, 1
      %s41 = scalar_select %p38, %s39, %s40
      %p44 = pneg %p38
      %p45 = scmp.eq.s32.totalorder %s15, 3
      %p46 = por %p44, %p45
      %p47 = scmp.ne.s32.totalorder %s39, %s42
      %p48 = scmp.eq.s32.totalorder %s15, 0
      %p49 = por %p47, %p48
      %p50 = scmp.ne.s32.totalorder %s39, %s42
      %p51 = scmp.eq.s32.totalorder %s20, 3
      %p52 = por %p50, %p51
      %p53 = scmp.ne.s32.totalorder %s42, %s43
      %p54 = scmp.eq.s32.totalorder %s20, 0
      %p55 = por %p53, %p54
      %p56 = scmp.ne.s32.totalorder %s42, %s43
      %p57 = scmp.eq.s32.totalorder %s21, 3
      %p58 = por %p56, %p57
      %p60 = scmp.ne.s32.totalorder %s43, %s59
      %p61 = scmp.eq.s32.totalorder %s21, 0
      %p62 = por %p60, %p61
      %s64 = sadd.s32 %s63, 1
      %p67 = scmp.eq.s32.totalorder %s15, 3
      %p68 = scmp.ne.s32.totalorder %s63, %s65
      %p69 = scmp.eq.s32.totalorder %s15, 0
      %p70 = por %p68, %p69
      %p71 = scmp.ne.s32.totalorder %s63, %s65
      %p72 = scmp.eq.s32.totalorder %s20, 3
      %p73 = por %p71, %p72
      %p74 = scmp.ne.s32.totalorder %s65, %s66
      %p75 = scmp.eq.s32.totalorder %s20, 0
      %p76 = por %p74, %p75
      %p77 = scmp.ne.s32.totalorder %s65, %s66
      %p78 = scmp.eq.s32.totalorder %s21, 3
      %p79 = por %p77, %p78
      %p81 = scmp.ne.s32.totalorder %s66, %s80
      %p82 = scmp.eq.s32.totalorder %s21, 0
      %p83 = por %p81, %p82
      %s85 = sadd.s32 %s84, 1
      %p88 = scmp.eq.s32.totalorder %s15, 3
      %p89 = scmp.ne.s32.totalorder %s84, %s86
      %p90 = scmp.eq.s32.totalorder %s15, 0
      %p91 = por %p89, %p90
      %p92 = scmp.ne.s32.totalorder %s84, %s86
      %p93 = scmp.eq.s32.totalorder %s20, 3
      %p94 = por %p92, %p93
      %p95 = scmp.ne.s32.totalorder %s86, %s87
      %p96 = scmp.eq.s32.totalorder %s20, 0
      %p97 = por %p95, %p96
      %p98 = scmp.ne.s32.totalorder %s86, %s87
      %p99 = scmp.eq.s32.totalorder %s21, 3
      %p100 = por %p98, %p99
      %p102 = scmp.ne.s32.totalorder %s87, %s101
      %p103 = scmp.eq.s32.totalorder %s21, 0
      %p104 = por %p102, %p103
      %s105 = ssub.s32 %s22, %s34
      %p106 = scmp.eq.s32.totalorder %s105, 0
      %s108 = sadd.s32 %s107, 1
      %s109 = scalar_select %p106, %s107, %s108
      %p112 = pneg %p106
      %p113 = scmp.eq.s32.totalorder %s15, 3
      %p114 = por %p112, %p113
      %p115 = scmp.ne.s32.totalorder %s107, %s110
      %p116 = scmp.eq.s32.totalorder %s15, 0
      %p117 = por %p115, %p116
      %p118 = scmp.ne.s32.totalorder %s107, %s110
      %p119 = scmp.eq.s32.totalorder %s20, 3
      %p120 = por %p118, %p119
      %p121 = scmp.ne.s32.totalorder %s110, %s111
      %p122 = scmp.eq.s32.totalorder %s20, 0
      %p123 = por %p121, %p122
      %p124 = scmp.ne.s32.totalorder %s110, %s111
      %p125 = scmp.eq.s32.totalorder %s21, 3
      %p126 = por %p124, %p125
      %p128 = scmp.ne.s32.totalorder %s111, %s127
      %p129 = scmp.eq.s32.totalorder %s21, 0
      %p130 = por %p128, %p129
      %p131 = scmp.le.s32.totalorder 1, %s15
      %p132 = scmp.lt.s32.totalorder %s15, 5
      %p133 = pnand %p131, %p132
      %p134 = pneg %p133
      // Predicated region
      $region9: #{tpu_custom_call.1} parent=5 // pred_check
        _
      $region10: #{tpu_custom_call.1} parent=5 // pred_check_branch
        %136 = sbr.rel (%p133) target = $region12
      $region11: #{tpu_custom_call.1} parent=5 // pred_region
        %s137 = ssub.s32 %s15, 1
        // Predicated region
        $region13: #{tpu_custom_call.1} parent=11 // pred_check
          %p138 = pneg %p76
        $region14: #{tpu_custom_call.1} parent=11 // pred_check_branch
          %140 = sbr.rel (%p138) target = $region16
        $region15: #{tpu_custom_call.1} parent=11 // pred_region
          _
        $region16: #{tpu_custom_call.1} parent=11 // pred_fallthru
          _
        // Predicated region
        $region17: #{tpu_custom_call.1} parent=11 // pred_check
          %p141 = pneg %p97
        $region18: #{tpu_custom_call.1} parent=11 // pred_check_branch
          %143 = sbr.rel (%p141) target = $region20
        $region19: #{tpu_custom_call.1} parent=11 // pred_region
          _
        $region20: #{tpu_custom_call.1} parent=11 // pred_fallthru
          _
      $region12: #{tpu_custom_call.1} parent=5 // pred_fallthru
        _
      %p144 = scmp.lt.s32.totalorder %s15, 4
      // Predicated region
      $region21: #{tpu_custom_call.1} parent=5 // pred_check
        %p145 = pneg %p144
      $region22: #{tpu_custom_call.1} parent=5 // pred_check_branch
        %147 = sbr.rel (%p145) target = $region24
      $region23: #{tpu_custom_call.1} parent=5 // pred_region
        // Predicated region
        $region25: #{tpu_custom_call.1} parent=23 // pred_check
          %p148 = pneg %p49
        $region26: #{tpu_custom_call.1} parent=23 // pred_check_branch
          %150 = sbr.rel (%p148) target = $region28
        $region27: #{tpu_custom_call.1} parent=23 // pred_region
          %s151 = sand.u32 %s39, 1
          %s152 = scalar_lea.sflag [#allocation5], %s151
          %s153 = sand.u32 %s39, 1
          %s154 = smul.addr %s153, 32
          %s155 = scalar_lea.vmem [#allocation4], %s154
          %s157 = ssub.s32 512, 512
          %158 = vsyncadd %s152, %s157
          %s159 = smul.addr %s22, 8
          %s160 = sadd.s32 %s23, %s159
          %s161 = smul.addr %s160, 128
          %s162 = scalar_lea.hbm %s0, %s161
          %s163 = sshll.u32 %s155, 4
          %s164 = int_to_ptr.vmem [resolvable:$true] %s163
          %169 = dma.hbm_to_vmem [thread:$0]  %s162, 512, %s164, %s152, 256, 128, 8
        $region28: #{tpu_custom_call.1} parent=23 // pred_fallthru
          _
      $region24: #{tpu_custom_call.1} parent=5 // pred_fallthru
        _
      %p170 = scmp.le.s32.totalorder 1, %s15
      %p171 = scmp.lt.s32.totalorder %s15, 5
      %p172 = pnand %p170, %p171
      %p173 = pneg %p172
      // Predicated region
      $region29: #{tpu_custom_call.1} parent=5 // pred_check
        _
      $region30: #{tpu_custom_call.1} parent=5 // pred_check_branch
        %175 = sbr.rel (%p172) target = $region32
      $region31: #{tpu_custom_call.1} parent=5 // pred_region
        %s176 = ssub.s32 %s15, 1
        %s177 = sand.u32 %s42, 1
        %s178 = scalar_lea.sflag [#allocation5], %s177
        %s179 = sand.u32 %s42, 1
        %s180 = smul.addr %s179, 32
        %s181 = scalar_lea.vmem [#allocation4], %s180
        // Predicated region
        $region33: #{tpu_custom_call.1} parent=31 // pred_check
          %p182 = pneg %p55
        $region34: #{tpu_custom_call.1} parent=31 // pred_check_branch
          %184 = sbr.rel (%p182) target = $region36
        $region35: #{tpu_custom_call.1} parent=31 // pred_region
          %185 = dma.done %s178, 512
        $region36: #{tpu_custom_call.1} parent=31 // pred_fallthru
          _
        %s186 = sand.u32 %s42, 1
        %s187 = scalar_lea.sflag [#allocation5], %s186
        %s188 = sand.u32 %s42, 1
        %s189 = smul.addr %s188, 32
        %s190 = scalar_lea.vmem [#allocation4], %s189
        %p191 = pneg %p55
        %p192 = pneg %p52
        %p193 = pneg %p76
        %p194 = pneg %p73
        %p195 = pneg %p97
        %p196 = pneg %p94
        %p197 = pneg %p123
        %p198 = pneg %p120
        %s199 = sand.u32 %s110, 1
        %s200 = scalar_lea.sflag [#allocation6], %s199
        %s201 = sand.u32 %s110, 1
        %s202 = scalar_lea.vmem [#allocation7], %s201
        %p203 = scmp.eq.s32.totalorder %s25, 0
        // Predicated region
        $region37: #{tpu_custom_call.1} parent=31 // pred_check
          %p204 = pneg %p203
        $region38: #{tpu_custom_call.1} parent=31 // pred_check_branch
          %206 = sbr.rel (%p204) target = $region40
        $region39: #{tpu_custom_call.1} parent=31 // pred_region
          %207 = vst [vmem:[#allocation2] sm:$0xff] 0.0
          %208 = vst [vmem:[#allocation2 + $0x8] sm:$0xff] 0.0
          %209 = vst [vmem:[#allocation2 + $0x10] sm:$0xff] 0.0
          %210 = vst [vmem:[#allocation2 + $0x18] sm:$0xff] 0.0
          %211 = vst [vmem:[#allocation3] sm:$0xff] -inf
          %212 = vst [vmem:[#allocation3 + $0x8] sm:$0xff] -inf
          %213 = vst [vmem:[#allocation3 + $0x10] sm:$0xff] -inf
          %214 = vst [vmem:[#allocation3 + $0x18] sm:$0xff] -inf
        $region40: #{tpu_custom_call.1} parent=31 // pred_fallthru
          _
        %v215 = vld [vmem:[%s181] sm:$0xff]
        %v216 = vld [vmem:[%s181 + $0x8] sm:$0xff]
        %v217 = vld [vmem:[%s181 + $0x10] sm:$0xff]
        %v218 = vld [vmem:[%s181 + $0x18] sm:$0xff]
        %v219 = vld [vmem:[#allocation2] sm:$0xff]
        %v220 = vld [vmem:[#allocation2 + $0x8] sm:$0xff]
        %v221 = vld [vmem:[#allocation2 + $0x10] sm:$0xff]
        %v222 = vld [vmem:[#allocation2 + $0x18] sm:$0xff]
        %v223 = vadd.f32 %v219, %v215
        %v224 = vadd.f32 %v220, %v216
        %v225 = vadd.f32 %v221, %v217
        %v226 = vadd.f32 %v222, %v218
        %227 = vst [vmem:[#allocation2] sm:$0xff] %v223
        %228 = vst [vmem:[#allocation2 + $0x8] sm:$0xff] %v224
        %229 = vst [vmem:[#allocation2 + $0x10] sm:$0xff] %v225
        %230 = vst [vmem:[#allocation2 + $0x18] sm:$0xff] %v226
        %v231 = vld [vmem:[#allocation3] sm:$0xff]
        %v232 = vld [vmem:[#allocation3 + $0x8] sm:$0xff]
        %v233 = vld [vmem:[#allocation3 + $0x10] sm:$0xff]
        %v234 = vld [vmem:[#allocation3 + $0x18] sm:$0xff]
        %v235 = vmax.f32 %v231, %v215
        %v236 = vmax.f32 %v232, %v216
        %v237 = vmax.f32 %v233, %v217
        %v238 = vmax.f32 %v234, %v218
        %239 = vst [vmem:[#allocation3] sm:$0xff] %v235
        %240 = vst [vmem:[#allocation3 + $0x8] sm:$0xff] %v236
        %241 = vst [vmem:[#allocation3 + $0x10] sm:$0xff] %v237
        %242 = vst [vmem:[#allocation3 + $0x18] sm:$0xff] %v238
        %p243 = scmp.eq.s32.totalorder %s25, 1
        // Predicated region
        $region41: #{tpu_custom_call.1} parent=31 // pred_check
          %p244 = pneg %p243
        $region42: #{tpu_custom_call.1} parent=31 // pred_check_branch
          %246 = sbr.rel (%p244) target = $region44
        $region43: #{tpu_custom_call.1} parent=31 // pred_region
          %v247 = vld [vmem:[#allocation2] sm:$0xff]
          %v248 = vld [vmem:[#allocation2 + $0x8] sm:$0xff]
          %v249 = vld [vmem:[#allocation2 + $0x10] sm:$0xff]
          %v250 = vld [vmem:[#allocation2 + $0x18] sm:$0xff]
          %251 = vadd.xlane.f32.xlu0 %v247
          %v252 = vpop.xlane.xlu0 %251
          %253 = vadd.xlane.f32.xlu0 %v248
          %v254 = vpop.xlane.xlu0 %253
          %255 = vadd.xlane.f32.xlu0 %v249
          %v256 = vpop.xlane.xlu0 %255
          %257 = vadd.xlane.f32.xlu0 %v250
          %v258 = vpop.xlane.xlu0 %257
          %v259 = vmul.f32 %v252, 0.00390625
          %v260 = vmul.f32 %v254, 0.00390625
          %v261 = vmul.f32 %v256, 0.00390625
          %v262 = vmul.f32 %v258, 0.00390625
          %v263 = vld [vmem:[#allocation3] sm:$0xff]
          %v264 = vld [vmem:[#allocation3 + $0x8] sm:$0xff]
          %v265 = vld [vmem:[#allocation3 + $0x10] sm:$0xff]
          %v266 = vld [vmem:[#allocation3 + $0x18] sm:$0xff]
          %267 = vmax.xlane.f32.xlu0 %v263
          %v268 = vpop.xlane.xlu0 %267
          %269 = vmax.xlane.f32.xlu0 %v264
          %v270 = vpop.xlane.xlu0 %269
          %271 = vmax.xlane.f32.xlu0 %v265
          %v272 = vpop.xlane.xlu0 %271
          %273 = vmax.xlane.f32.xlu0 %v266
          %v274 = vpop.xlane.xlu0 %273
          %v279 = vlaneseq
          %v280 = vand.u32 %v279, 127
          %v281 = vlaneseq
          %v282 = vshrl.u32 %v281, 7
          %v283 = vsub.s32 %v280, %v282
          %v284 = vrot.slane %v259, %v283
          %v285 = vadd.s32 %v280, 4294967288
          %v286 = vlaneseq
          %v287 = vshrl.u32 %v286, 7
          %v288 = vsub.s32 %v285, %v287
          %v289 = vrot.slane %v260, %v288
          %vm290 = vcmask 130112
          %v291 = vsel %vm290, %v289, %v284
          %v292 = vadd.s32 %v280, 4294967280
          %v293 = vlaneseq
          %v294 = vshrl.u32 %v293, 7
          %v295 = vsub.s32 %v292, %v294
          %v296 = vrot.slane %v261, %v295
          %vm297 = vcmask 195712
          %v298 = vsel %vm297, %v296, %v291
          %v299 = vadd.s32 %v280, 4294967272
          %v300 = vlaneseq
          %v301 = vshrl.u32 %v300, 7
          %v302 = vsub.s32 %v299, %v301
          %v303 = vrot.slane %v262, %v302
          %vm304 = vcmask 261312
          %v305 = vsel %vm304, %v303, %v298
          %v311 = vlaneseq
          %v312 = vshrl.u32 %v311, 7
          %v313 = vsub.s32 %v280, %v312
          %v314 = vrot.slane %v268, %v313
          %v315 = vlaneseq
          %v316 = vshrl.u32 %v315, 7
          %v317 = vsub.s32 %v285, %v316
          %v318 = vrot.slane %v270, %v317
          %v319 = vsel %vm290, %v318, %v314
          %v320 = vlaneseq
          %v321 = vshrl.u32 %v320, 7
          %v322 = vsub.s32 %v292, %v321
          %v323 = vrot.slane %v272, %v322
          %v324 = vsel %vm297, %v323, %v319
          %v325 = vlaneseq
          %v326 = vshrl.u32 %v325, 7
          %v327 = vsub.s32 %v299, %v326
          %v328 = vrot.slane %v274, %v327
          %v329 = vsel %vm304, %v328, %v324
          %vm331 = vcmask 1040384
          %v332 = vsel %vm331, %v305, %v329
          %v333 = vld [vmem:[%s1] sm:$0xf]
          %v334 = vld [vmem:[%s2] sm:$0xff]
          %v335 = vld [vmem:[%s2 + $0x8] sm:$0xff]
          %v336 = vld [vmem:[%s2 + $0x10] sm:$0xff]
          %v337 = vld [vmem:[%s2 + $0x18] sm:$0xff]
          %vm338 = vcmask 261120
          %v340 = vsel %vm338, %v332, 0
          %v343 = vsel %vm338, %v333, 0
          %345 = vmatprep.subr.mxu0 0.0
          %346 = vmatpush1.xpose.msra.mxu0 %v343
          %347 = vmatprep.subr.mxu0 0.0
          %348 = vmatpush1.xpose.msra.mxu0 0.0
          %349 = vmatprep.subr.mxu0 0.0
          %350 = vmatpush1.xpose.msra.mxu0 0.0
          %351 = vmatprep.subr.mxu0 0.0
          %352 = vmatpush1.xpose.msra.mxu0 0.0
          %353 = vmatprep.subr.mxu0 0.0
          %354 = vmatpush1.xpose.msra.mxu0 0.0
          %355 = vmatprep.subr.mxu0 0.0
          %356 = vmatpush1.xpose.msra.mxu0 0.0
          %357 = vmatprep.subr.mxu0 0.0
          %358 = vmatpush1.xpose.msra.mxu0 0.0
          %359 = vmatprep.subr.mxu0 0.0
          %360 = vmatpush1.xpose.msra.mxu0 0.0
          %361 = vmatprep.subr.mxu0 0.0
          %362 = vmatpush1.xpose.msra.mxu0 0.0
          %363 = vmatprep.subr.mxu0 0.0
          %364 = vmatpush1.xpose.msra.mxu0 0.0
          %365 = vmatprep.subr.mxu0 0.0
          %366 = vmatpush1.xpose.msra.mxu0 0.0
          %367 = vmatprep.subr.mxu0 0.0
          %368 = vmatpush1.xpose.msra.mxu0 0.0
          %369 = vmatprep.subr.mxu0 0.0
          %370 = vmatpush1.xpose.msra.mxu0 0.0
          %371 = vmatprep.subr.mxu0 0.0
          %372 = vmatpush1.xpose.msra.mxu0 0.0
          %373 = vmatprep.subr.mxu0 0.0
          %374 = vmatpush1.xpose.msra.mxu0 0.0
          %375 = vmatprep.subr.mxu0 0.0
          %376 = vmatpush1.xpose.msra.mxu0 0.0
          %377 = vmatprep.subr.mxu0 0.0
          %378 = vmatpush1.xpose.msra.mxu0 0.0
          %379 = vmatprep.subr.mxu0 0.0
          %380 = vmatpush1.xpose.msra.mxu0 0.0
          %381 = vmatprep.subr.mxu0 0.0
          %382 = vmatpush1.xpose.msra.mxu0 0.0
          %383 = vmatprep.subr.mxu0 0.0
          %384 = vmatpush1.xpose.msra.mxu0 0.0
          %385 = vmatprep.subr.mxu0 0.0
          %386 = vmatpush1.xpose.msra.mxu0 0.0
          %387 = vmatprep.subr.mxu0 0.0
          %388 = vmatpush1.xpose.msra.mxu0 0.0
          %389 = vmatprep.subr.mxu0 0.0
          %390 = vmatpush1.xpose.msra.mxu0 0.0
          %391 = vmatprep.subr.mxu0 0.0
          %392 = vmatpush1.xpose.msra.mxu0 0.0
          %393 = vmatprep.subr.mxu0 0.0
          %394 = vmatpush1.xpose.msra.mxu0 0.0
          %395 = vmatprep.subr.mxu0 0.0
          %396 = vmatpush1.xpose.msra.mxu0 0.0
          %397 = vmatprep.subr.mxu0 0.0
          %398 = vmatpush1.xpose.msra.mxu0 0.0
          %399 = vmatprep.subr.mxu0 0.0
          %400 = vmatpush1.xpose.msra.mxu0 0.0
          %401 = vmatprep.subr.mxu0 0.0
          %402 = vmatpush1.xpose.msra.mxu0 0.0
          %403 = vmatprep.subr.mxu0 0.0
          %404 = vmatpush1.xpose.msra.mxu0 0.0
          %405 = vmatprep.subr.mxu0 0.0
          %406 = vmatpush1.xpose.msra.mxu0 0.0
          %407 = vmatprep.subr.mxu0 0.0
          %408 = vmatpush1.xpose.msra.mxu0 0.0
          %409 = vmatprep.mubr.f32.mxu0 0.0
          %410 = vmatmul.mubr.f32.gmra.mrb[0].mxu0 %v340
          %v411 = vpop.f32.mrb[0].mxu0
          %v412 = vadd.f32 0.0, %v411
          %v413 = vpop.f32.mrb[0].mxu0
          %414 = vdwg.mxu0
          %v415 = vmax.f32 %v412, 0.0
          %vm416 = vcmask 31744
          %v418 = vsel %vm416, %v415, 0
          %v421 = vsel %vm416, %v334, 0
          %v424 = vsel %vm416, %v335, 0
          %v427 = vsel %vm416, %v336, 0
          %v430 = vsel %vm416, %v337, 0
          %432 = vmatprep.subr.mxu0 0.0
          %433 = vmatpush1.xpose.msra.mxu0 %v421
          %434 = vmatprep.subr.mxu0 0.0
          %435 = vmatpush1.xpose.msra.mxu0 %v424
          %436 = vmatprep.subr.mxu0 0.0
          %437 = vmatpush1.xpose.msra.mxu0 %v427
          %438 = vmatprep.subr.mxu0 0.0
          %439 = vmatpush1.xpose.msra.mxu0 %v430
          %440 = vmatprep.subr.mxu0 0.0
          %441 = vmatpush1.xpose.msra.mxu0 0.0
          %442 = vmatprep.subr.mxu0 0.0
          %443 = vmatpush1.xpose.msra.mxu0 0.0
          %444 = vmatprep.subr.mxu0 0.0
          %445 = vmatpush1.xpose.msra.mxu0 0.0
          %446 = vmatprep.subr.mxu0 0.0
          %447 = vmatpush1.xpose.msra.mxu0 0.0
          %448 = vmatprep.subr.mxu0 0.0
          %449 = vmatpush1.xpose.msra.mxu0 0.0
          %450 = vmatprep.subr.mxu0 0.0
          %451 = vmatpush1.xpose.msra.mxu0 0.0
          %452 = vmatprep.subr.mxu0 0.0
          %453 = vmatpush1.xpose.msra.mxu0 0.0
          %454 = vmatprep.subr.mxu0 0.0
          %455 = vmatpush1.xpose.msra.mxu0 0.0
          %456 = vmatprep.subr.mxu0 0.0
          %457 = vmatpush1.xpose.msra.mxu0 0.0
          %458 = vmatprep.subr.mxu0 0.0
          %459 = vmatpush1.xpose.msra.mxu0 0.0
          %460 = vmatprep.subr.mxu0 0.0
          %461 = vmatpush1.xpose.msra.mxu0 0.0
          %462 = vmatprep.subr.mxu0 0.0
          %463 = vmatpush1.xpose.msra.mxu0 0.0
          %464 = vmatprep.subr.mxu0 0.0
          %465 = vmatpush1.xpose.msra.mxu0 0.0
          %466 = vmatprep.subr.mxu0 0.0
          %467 = vmatpush1.xpose.msra.mxu0 0.0
          %468 = vmatprep.subr.mxu0 0.0
          %469 = vmatpush1.xpose.msra.mxu0 0.0
          %470 = vmatprep.subr.mxu0 0.0
          %471 = vmatpush1.xpose.msra.mxu0 0.0
          %472 = vmatprep.subr.mxu0 0.0
          %473 = vmatpush1.xpose.msra.mxu0 0.0
          %474 = vmatprep.subr.mxu0 0.0
          %475 = vmatpush1.xpose.msra.mxu0 0.0
          %476 = vmatprep.subr.mxu0 0.0
          %477 = vmatpush1.xpose.msra.mxu0 0.0
          %478 = vmatprep.subr.mxu0 0.0
          %479 = vmatpush1.xpose.msra.mxu0 0.0
          %480 = vmatprep.subr.mxu0 0.0
          %481 = vmatpush1.xpose.msra.mxu0 0.0
          %482 = vmatprep.subr.mxu0 0.0
          %483 = vmatpush1.xpose.msra.mxu0 0.0
          %484 = vmatprep.subr.mxu0 0.0
          %485 = vmatpush1.xpose.msra.mxu0 0.0
          %486 = vmatprep.subr.mxu0 0.0
          %487 = vmatpush1.xpose.msra.mxu0 0.0
          %488 = vmatprep.subr.mxu0 0.0
          %489 = vmatpush1.xpose.msra.mxu0 0.0
          %490 = vmatprep.subr.mxu0 0.0
          %491 = vmatpush1.xpose.msra.mxu0 0.0
          %492 = vmatprep.subr.mxu0 0.0
          %493 = vmatpush1.xpose.msra.mxu0 0.0
          %494 = vmatprep.subr.mxu0 0.0
          %495 = vmatpush1.xpose.msra.mxu0 0.0
          %496 = vmatprep.mubr.f32.mxu0 0.0
          %497 = vmatmul.mubr.f32.gmra.mrb[0].mxu0 %v418
          %v498 = vpop.f32.mrb[0].mxu0
          %v499 = vadd.f32 0.0, %v498
          %v500 = vpop.f32.mrb[0].mxu0
          %501 = vdwg.mxu0
          %v503 = vrot.slane %v499, 1
          %v505 = vadd.f32 %v499, %v503
          %v506 = vxor.u32 %v505, 2147483648
          %v507 = vmul.f32 %v506, 1.442695
          %v508 = vpow.pop %v507
          %v509 = vadd.f32 %v508, 1.0
          %v510 = vrcp.pop %v509
          %v511 = vmul.f32 1.0, %v510
          %vm512 = vcmask 253952
          %513 = vst.msk [vmem:[%s202] sm:$0x1] %vm512, %v511
        $region44: #{tpu_custom_call.1} parent=31 // pred_fallthru
          _
        %s514 = sand.u32 %s110, 1
        %s515 = scalar_lea.sflag [#allocation6], %s514
        %s516 = sand.u32 %s110, 1
        %s517 = scalar_lea.vmem [#allocation7], %s516
        // Predicated region
        $region45: #{tpu_custom_call.1} parent=31 // pred_check
          %p518 = pneg %p120
        $region46: #{tpu_custom_call.1} parent=31 // pred_check_branch
          %520 = sbr.rel (%p518) target = $region48
        $region47: #{tpu_custom_call.1} parent=31 // pred_region
          %s522 = ssub.s32 16, 16
          %523 = vsyncadd %s515, %s522
          %s524 = smul.addr %s24, 16
          %s525 = scalar_lea.hbm %s3, %s524
          %s527 = sshll.u32 %s517, 4
          %s528 = int_to_ptr.vmem [resolvable:$true] %s527
          %530 = dma.vmem_to_hbm [thread:$0]  %s528, 16, %s525, %s515
        $region48: #{tpu_custom_call.1} parent=31 // pred_fallthru
          _
      $region32: #{tpu_custom_call.1} parent=5 // pred_fallthru
        _
      %p531 = scmp.le.s32.totalorder 2, %s15
      // Predicated region
      $region49: #{tpu_custom_call.1} parent=5 // pred_check
        %p532 = pneg %p531
      $region50: #{tpu_custom_call.1} parent=5 // pred_check_branch
        %534 = sbr.rel (%p532) target = $region52
      $region51: #{tpu_custom_call.1} parent=5 // pred_region
        %s535 = ssub.s32 %s15, 2
        // Predicated region
        $region53: #{tpu_custom_call.1} parent=51 // pred_check
          %p536 = pneg %p126
        $region54: #{tpu_custom_call.1} parent=51 // pred_check_branch
          %538 = sbr.rel (%p536) target = $region56
        $region55: #{tpu_custom_call.1} parent=51 // pred_region
          %s539 = sand.u32 %s111, 1
          %s540 = scalar_lea.sflag [#allocation6], %s539
          %s541 = sand.u32 %s111, 1
          %s542 = scalar_lea.vmem [#allocation7], %s541
          %543 = dma.done %s540, 16
        $region56: #{tpu_custom_call.1} parent=51 // pred_fallthru
          _
      $region52: #{tpu_custom_call.1} parent=5 // pred_fallthru
        _
    $region6: #{tpu_custom_call.1} parent=1 // loop_footer
      %s19 = sadd.s32 1, %s15
    $region7: #{tpu_custom_call.1} parent=1 // loop_footer_branch
      %14 = sbr.rel target = $region3
    $region8: #{tpu_custom_call.1} parent=1 // loop_exit
      _
    %544 = vsyncpa [#allocation5], 1
    %s545 = scalar_lea.sflag [#allocation5], 1
    %546 = vsyncpa %s545, 1
    %547 = vsyncpa [#allocation6], 1
    %s548 = scalar_lea.sflag [#allocation6], 1
    %549 = vsyncpa %s548, 1

</llo_original>
